<compile_context>
chip_gen: v7x
topology: tpu7x:2x2x1
jax: 0.10.0
libtpu: 0.0.40
codegen_flags: <defaults>
</compile_context>

<pallas_src>
import jax
import jax.numpy as jnp
from jax.experimental import pallas as pl
from jax.experimental.pallas import tpu as pltpu

# ----------------------------- configuration ------------------------------
B = 8                 # batch
F = 4                 # number of sparse features
D = 16                # emb_dim_per_feature
INPUT_DIMS = F * D    # 64
N_EXPERT = 3
TASK_TYPES = ("classification", "regression")
N_TASK = len(TASK_TYPES)
TOWER_HIDDEN = 8      # tower_params_list[i]["dims"] = [8]
VOCAB = 10

CLIP_MIN = 1e-15
CLIP_MAX = 1.0 - 1e-15
BN_SCALE = 1.0 / float(jnp.sqrt(1.0 + 1e-5))   # eval BatchNorm1d, default stats

# column layout of the fused RHS:  [ s (=ex@P) | expert deep W | gate W | q (=(ex*ex)@P) ]
S_OFF = 0
WD_OFF = D                                    # 16
WG_OFF = D + N_EXPERT * D                     # 64
Q_OFF = WG_OFF + N_TASK * N_EXPERT            # 70
W_COLS = Q_OFF + D                            # 86
K_FUSED = 2 * INPUT_DIMS                      # 128


# ------------------------------ Pallas kernel ------------------------------
def mmoe_kernel(ex_ref, wf_ref, wt1_ref, wt2_ref, out_ref):
    ex = ex_ref[...]                                            # (bt, 64) f32

    # FM ex^2 term fused along K: one MXU pass at K=128 / N=86.
    lhs = jnp.concatenate([ex, ex * ex], axis=1)                # (bt, 128)
    W = wf_ref[0:K_FUSED, :]                                    # (128, 86) block-structured, BN folded
    bias = wf_ref[K_FUSED:K_FUSED + 1, :]                       # (1, 86)   zeros on s/q cols
    big = jnp.dot(lhs, W, preferred_element_type=jnp.float32) + bias   # (bt, 86)

    s = big[:, S_OFF:S_OFF + D]                                 # sum_f e        (bt, D)
    q = big[:, Q_OFF:Q_OFF + D]                                 # sum_f e^2      (bt, D)
    fm = 0.5 * (s * s - q)                                      # FM 2nd order (shared by experts)

    deep = jnp.maximum(big[:, WD_OFF:WD_OFF + N_EXPERT * D], 0.0)   # ReLU(BN(Linear)), (bt, E*D)
    glog = big[:, WG_OFF:WG_OFF + N_TASK * N_EXPERT]                # gate logits,      (bt, T*E)

    # per-task gate softmax + expert pooling; softmax sums to 1 so fm factors out.
    pooled = []
    for t in range(N_TASK):
        g = jax.nn.softmax(glog[:, t * N_EXPERT:(t + 1) * N_EXPERT], axis=-1)
        acc = g[:, 0:1] * deep[:, 0:D]
        for e in range(1, N_EXPERT):
            acc = acc + g[:, e:e + 1] * deep[:, e * D:(e + 1) * D]
        pooled.append(fm + acc)                                 # (bt, D)
    tower_in = jnp.concatenate(pooled, axis=1)                  # (bt, T*D)

    # both towers fused block-diagonally (BN folded, bias as last row)
    W1 = wt1_ref[0:N_TASK * D, :]                               # (T*D, T*H)
    b1 = wt1_ref[N_TASK * D:N_TASK * D + 1, :]                  # (1,   T*H)
    h = jnp.maximum(jnp.dot(tower_in, W1, preferred_element_type=jnp.float32) + b1, 0.0)

    W2 = wt2_ref[0:N_TASK * TOWER_HIDDEN, :]                    # (T*H, T)
    b2 = wt2_ref[N_TASK * TOWER_HIDDEN:N_TASK * TOWER_HIDDEN + 1, :]   # (1, T)
    z = jnp.dot(h, W2, preferred_element_type=jnp.float32) + b2        # (bt, T)

    # prediction layer: sigmoid on classification lanes (EUP), single lane-mask select.
    cls_cols = [t for t, tt in enumerate(TASK_TYPES) if tt == "classification"]
    if cls_cols:
        lane = jax.lax.broadcasted_iota(jnp.int32, z.shape, 1)
        is_cls = lane == cls_cols[0]
        for c in cls_cols[1:]:
            is_cls = jnp.logical_or(is_cls, lane == c)
        z = jnp.where(is_cls, jax.nn.sigmoid(z), z)
    out_ref[...] = jnp.clip(z, CLIP_MIN, CLIP_MAX)


# ------------------------------- wrapper -----------------------------------
def deepfm4mmoe_forward(embed_x, packed, *, tile_b=None):
    wfused, wt1, wt2 = packed
    b_total = embed_x.shape[0]
    if tile_b is None:
        # Mem-bound on the embed_x read: large tiles amortize the ~0.35us/step
        # pipeline overhead.  4096 rows ~= 8-9 MiB live f32 VMEM -> fits every
        # generation's scoped default.  v5e/v6e can go to ~8192; v7x (64 MiB
        # physical VMEM) should stay <= 4096 and keep the grid length even so
        # dimension_semantics=("parallel",) splits across both TensorCores.
        cap = 4096
        tile_b = b_total if b_total <= cap else cap
    grid = (pl.cdiv(b_total, tile_b),)

    return pl.pallas_call(
        mmoe_kernel,
        out_shape=jax.ShapeDtypeStruct((b_total, N_TASK), jnp.float32),
        grid_spec=pltpu.PrefetchScalarGridSpec(
            num_scalar_prefetch=0,
            grid=grid,
            in_specs=[
                pl.BlockSpec((tile_b, INPUT_DIMS), lambda i: (i, 0)),
                # weights resident: constant block index across the batch grid
                pl.BlockSpec(wfused.shape, lambda i: (0, 0)),
                pl.BlockSpec(wt1.shape, lambda i: (0, 0)),
                pl.BlockSpec(wt2.shape, lambda i: (0, 0)),
            ],
            # Keep the narrow (tile_b, 2) output: padding to 128 lanes would
            # multiply writeback bytes ~64x on a read-bound kernel.
            out_specs=pl.BlockSpec((tile_b, N_TASK), lambda i: (i, 0)),
        ),
        compiler_params=pltpu.CompilerParams(
            dimension_semantics=("parallel",),
            vmem_limit_bytes=32 * 1024 * 1024,
        ),
    )(embed_x, wfused, wt1, wt2)


# --------------------------- host-side packing ------------------------------
def _block_diag(mats):
    rows = sum(m.shape[0] for m in mats)
    cols = sum(m.shape[1] for m in mats)
    out = jnp.zeros((rows, cols), mats[0].dtype)
    r = c = 0
    for m in mats:
        out = out.at[r:r + m.shape[0], c:c + m.shape[1]].set(m)
        r += m.shape[0]
        c += m.shape[1]
    return out


def pack_params(p):
    sc = BN_SCALE
    # fused RHS, block-structured over the K-fused [ex | ex*ex] LHS, BN folded.
    P = jnp.tile(jnp.eye(D, dtype=jnp.float32), (F, 1))                          # (64, 16)
    wd = jnp.concatenate([p["wd"][e] for e in range(N_EXPERT)], axis=1) * sc     # (64, 48)
    wg = jnp.concatenate([p["wg"][t] for t in range(N_TASK)], axis=1) * sc       # (64, 6)
    top = jnp.concatenate(                                                       # ex rows
        [P, wd, wg, jnp.zeros((INPUT_DIMS, D), jnp.float32)], axis=1)            # (64, 86)
    bot = jnp.concatenate(                                                       # ex*ex rows
        [jnp.zeros((INPUT_DIMS, Q_OFF), jnp.float32), P], axis=1)                # (64, 86)
    bias = jnp.concatenate(
        [jnp.zeros((1, D), jnp.float32),
         jnp.concatenate([p["bd"][e] for e in range(N_EXPERT)], axis=1) * sc,
         jnp.concatenate([p["bg"][t] for t in range(N_TASK)], axis=1) * sc,
         jnp.zeros((1, D), jnp.float32)],
        axis=1)                                                                  # (1, 86)
    wfused = jnp.concatenate([top, bot, bias], axis=0)                           # (129, 86)

    # tower layer 1 (block-diag over tasks, BN folded, bias as last row)
    w1bd = _block_diag([p["w1"][t] for t in range(N_TASK)]) * sc                 # (32, 16)
    b1 = jnp.concatenate([p["b1"][t] for t in range(N_TASK)], axis=1) * sc       # (1, 16)
    wt1 = jnp.concatenate([w1bd, b1], axis=0)                                    # (33, 16)

    # tower output layer (no BN)
    w2bd = _block_diag([p["w2"][t] for t in range(N_TASK)])                      # (16, 2)
    b2 = jnp.concatenate([p["b2"][t] for t in range(N_TASK)], axis=1)            # (1, 2)
    wt2 = jnp.concatenate([w2bd, b2], axis=0)                                    # (17, 2)

    return wfused, wt1, wt2


# ------------------------------ parameter init -----------------------------
def init_params(key):
    ks = jax.random.split(key, 6)
    p = {
        "wd": 0.1 * jax.random.normal(ks[0], (N_EXPERT, INPUT_DIMS, D), jnp.float32),
        "bd": jnp.zeros((N_EXPERT, 1, D), jnp.float32),
        "wg": 0.1 * jax.random.normal(ks[1], (N_TASK, INPUT_DIMS, N_EXPERT), jnp.float32),
        "bg": jnp.zeros((N_TASK, 1, N_EXPERT), jnp.float32),
        "w1": 0.1 * jax.random.normal(ks[2], (N_TASK, D, TOWER_HIDDEN), jnp.float32),
        "b1": jnp.zeros((N_TASK, 1, TOWER_HIDDEN), jnp.float32),
        "w2": 0.1 * jax.random.normal(ks[3], (N_TASK, TOWER_HIDDEN, 1), jnp.float32),
        "b2": jnp.zeros((N_TASK, 1, 1), jnp.float32),
        "emb": 0.1 * jax.random.normal(ks[4], (F, VOCAB, D), jnp.float32),
    }
    return p, ks[5]


# ------------------------ pure-JAX reference (check) ------------------------
def reference(embed_x, embed_fm, p):
    s = embed_fm.sum(axis=1)
    fm = 0.5 * (s * s - (embed_fm * embed_fm).sum(axis=1))
    experts = [fm + jnp.maximum((embed_x @ p["wd"][e] + p["bd"][e]) * BN_SCALE, 0.0)
               for e in range(N_EXPERT)]
    outs = []
    for t in range(N_TASK):
        g = jax.nn.softmax((embed_x @ p["wg"][t] + p["bg"][t]) * BN_SCALE, axis=-1)
        pooled = sum(g[:, e:e + 1] * experts[e] for e in range(N_EXPERT))
        h = jnp.maximum((pooled @ p["w1"][t] + p["b1"][t]) * BN_SCALE, 0.0)
        y = h @ p["w2"][t] + p["b2"][t]
        if TASK_TYPES[t] == "classification":
            y = jax.nn.sigmoid(y)
        outs.append(jnp.clip(y, CLIP_MIN, CLIP_MAX))
    return jnp.concatenate(outs, axis=1)


# --------------------------------- driver ----------------------------------
if __name__ == "__main__":
    key = jax.random.PRNGKey(0)
    params, key = init_params(key)

    # x: integer sparse-feature indices, shape (B, F)  (EmbeddingLayer input)
    x_idx = jax.random.randint(key, (B, F), 0, VOCAB)

    # EmbeddingLayer glue (lookup is not the hot path)
    embed_fm = jnp.stack([params["emb"][f][x_idx[:, f]] for f in range(F)], axis=1)  # (B, F, D)
    embed_x = embed_fm.reshape(B, INPUT_DIMS)                                        # (B, F*D)

    packed = pack_params(params)
    y = deepfm4mmoe_forward(embed_x, packed)
    y = jax.block_until_ready(y)

    y_ref = reference(embed_x, embed_fm, params)

    assert y.shape == (B, N_TASK) and y.dtype == jnp.float32
    assert bool(jnp.all(jnp.isfinite(y)))
    assert bool(jnp.allclose(y, y_ref, rtol=1e-5, atol=1e-5))
    print("KERNEL_OK")
</pallas_src>

<mosaic_0001>
module attributes {stable_mosaic.version = 11 : i64} {
  func.func @mmoe_kernel(%arg0: i32, %arg1: memref<8x64xf32, #tpu.memory_space<vmem>>, %arg2: memref<129x86xf32, #tpu.memory_space<vmem>>, %arg3: memref<33x16xf32, #tpu.memory_space<vmem>>, %arg4: memref<17x2xf32, #tpu.memory_space<vmem>>, %arg5: memref<8x2xf32, #tpu.memory_space<vmem>>) attributes {dimension_semantics = [#tpu.dimension_semantics<parallel>], iteration_bounds = array<i64: 1>, scalar_prefetch = 0 : i64, scratch_operands = 0 : i64, tpu.core_type = #tpu.core_type<tc>, window_params = [{transform_indices = @transform_0, window_bounds = array<i64: 8, 64>}, {pipeline_mode = #tpu.pipeline_mode<synchronous>, transform_indices = @transform_1, window_bounds = array<i64: 129, 86>}, {pipeline_mode = #tpu.pipeline_mode<synchronous>, transform_indices = @transform_2, window_bounds = array<i64: 33, 16>}, {pipeline_mode = #tpu.pipeline_mode<synchronous>, transform_indices = @transform_3, window_bounds = array<i64: 17, 2>}, {transform_indices = @transform_4, window_bounds = array<i64: 8, 2>}]} {
    %c0 = arith.constant 0 : index
    %c0_0 = arith.constant 0 : index
    %0 = vector.load %arg1[%c0, %c0_0] : memref<8x64xf32, #tpu.memory_space<vmem>>, vector<8x64xf32>
    %1 = arith.mulf %0, %0 : vector<8x64xf32>
    %2 = tpu.concatenate %0, %1 in 1 : vector<8x64xf32>, vector<8x64xf32> -> vector<8x128xf32>
    %c0_1 = arith.constant 0 : index
    %c0_2 = arith.constant 0 : index
    %3 = vector.load %arg2[%c0_1, %c0_2] : memref<129x86xf32, #tpu.memory_space<vmem>>, vector<128x86xf32>
    %c128 = arith.constant 128 : index
    %c0_3 = arith.constant 0 : index
    %4 = vector.load %arg2[%c128, %c0_3] : memref<129x86xf32, #tpu.memory_space<vmem>>, vector<1x86xf32>
    %cst = arith.constant dense<0.000000e+00> : vector<8x86xf32>
    %5 = tpu.matmul %2, %3, %cst {dimension_numbers = #tpu.dot_dimension_numbers<[1], [0], [0], [1], [0, 0, 1, 1], [], []>} : vector<8x128xf32>, vector<128x86xf32>, vector<8x86xf32> -> vector<8x86xf32>
    %6 = vector.broadcast %4 : vector<1x86xf32> to vector<8x86xf32>
    %7 = arith.addf %5, %6 : vector<8x86xf32>
    %8 = vector.extract_strided_slice %7 {offsets = [0, 0], sizes = [8, 16], strides = [1, 1]} : vector<8x86xf32> to vector<8x16xf32>
    %9 = vector.extract_strided_slice %7 {offsets = [0, 70], sizes = [8, 16], strides = [1, 1]} : vector<8x86xf32> to vector<8x16xf32>
    %10 = arith.mulf %8, %8 : vector<8x16xf32>
    %11 = arith.subf %10, %9 : vector<8x16xf32>
    %cst_4 = arith.constant 5.000000e-01 : f32
    %12 = vector.broadcast %cst_4 : f32 to vector<8x16xf32>
    %13 = arith.mulf %12, %11 : vector<8x16xf32>
    %14 = vector.extract_strided_slice %7 {offsets = [0, 16], sizes = [8, 48], strides = [1, 1]} : vector<8x86xf32> to vector<8x48xf32>
    %cst_5 = arith.constant 0.000000e+00 : f32
    %15 = vector.broadcast %cst_5 : f32 to vector<8x48xf32>
    %16 = arith.maximumf %14, %15 : vector<8x48xf32>
    %17 = vector.extract_strided_slice %7 {offsets = [0, 64], sizes = [8, 6], strides = [1, 1]} : vector<8x86xf32> to vector<8x6xf32>
    %18 = vector.extract_strided_slice %17 {offsets = [0, 0], sizes = [8, 3], strides = [1, 1]} : vector<8x6xf32> to vector<8x3xf32>
    %cst_6 = arith.constant dense<0xFF800000> : vector<8xf32>
    %19 = vector.multi_reduction <maximumf>, %18, %cst_6 [1] : vector<8x3xf32> to vector<8xf32>
    %cst_7 = arith.constant 0xFF800000 : f32
    %20 = vector.broadcast %cst_7 : f32 to vector<8xf32>
    %21 = arith.maximumf %20, %19 : vector<8xf32>
    %22 = vector.shape_cast %21 : vector<8xf32> to vector<8x1xf32>
    %23 = vector.broadcast %22 : vector<8x1xf32> to vector<8x3xf32>
    %24 = arith.subf %18, %23 : vector<8x3xf32>
    %25 = math.exp %24 : vector<8x3xf32>
    %cst_8 = arith.constant dense<0.000000e+00> : vector<8xf32>
    %26 = vector.multi_reduction <add>, %25, %cst_8 [1] : vector<8x3xf32> to vector<8xf32>
    %27 = vector.shape_cast %26 : vector<8xf32> to vector<8x1xf32>
    %28 = vector.broadcast %27 : vector<8x1xf32> to vector<8x3xf32>
    %29 = arith.divf %25, %28 : vector<8x3xf32>
    %30 = vector.extract_strided_slice %29 {offsets = [0, 0], sizes = [8, 1], strides = [1, 1]} : vector<8x3xf32> to vector<8x1xf32>
    %31 = vector.extract_strided_slice %16 {offsets = [0, 0], sizes = [8, 16], strides = [1, 1]} : vector<8x48xf32> to vector<8x16xf32>
    %32 = vector.broadcast %30 : vector<8x1xf32> to vector<8x16xf32>
    %33 = arith.mulf %32, %31 : vector<8x16xf32>
    %34 = vector.extract_strided_slice %29 {offsets = [0, 1], sizes = [8, 1], strides = [1, 1]} : vector<8x3xf32> to vector<8x1xf32>
    %35 = vector.extract_strided_slice %16 {offsets = [0, 16], sizes = [8, 16], strides = [1, 1]} : vector<8x48xf32> to vector<8x16xf32>
    %36 = vector.broadcast %34 : vector<8x1xf32> to vector<8x16xf32>
    %37 = arith.mulf %36, %35 : vector<8x16xf32>
    %38 = arith.addf %33, %37 : vector<8x16xf32>
    %39 = vector.extract_strided_slice %29 {offsets = [0, 2], sizes = [8, 1], strides = [1, 1]} : vector<8x3xf32> to vector<8x1xf32>
    %40 = vector.extract_strided_slice %16 {offsets = [0, 32], sizes = [8, 16], strides = [1, 1]} : vector<8x48xf32> to vector<8x16xf32>
    %41 = vector.broadcast %39 : vector<8x1xf32> to vector<8x16xf32>
    %42 = arith.mulf %41, %40 : vector<8x16xf32>
    %43 = arith.addf %38, %42 : vector<8x16xf32>
    %44 = arith.addf %13, %43 : vector<8x16xf32>
    %45 = vector.extract_strided_slice %17 {offsets = [0, 3], sizes = [8, 3], strides = [1, 1]} : vector<8x6xf32> to vector<8x3xf32>
    %cst_9 = arith.constant dense<0xFF800000> : vector<8xf32>
    %46 = vector.multi_reduction <maximumf>, %45, %cst_9 [1] : vector<8x3xf32> to vector<8xf32>
    %cst_10 = arith.constant 0xFF800000 : f32
    %47 = vector.broadcast %cst_10 : f32 to vector<8xf32>
    %48 = arith.maximumf %47, %46 : vector<8xf32>
    %49 = vector.shape_cast %48 : vector<8xf32> to vector<8x1xf32>
    %50 = vector.broadcast %49 : vector<8x1xf32> to vector<8x3xf32>
    %51 = arith.subf %45, %50 : vector<8x3xf32>
    %52 = math.exp %51 : vector<8x3xf32>
    %cst_11 = arith.constant dense<0.000000e+00> : vector<8xf32>
    %53 = vector.multi_reduction <add>, %52, %cst_11 [1] : vector<8x3xf32> to vector<8xf32>
    %54 = vector.shape_cast %53 : vector<8xf32> to vector<8x1xf32>
    %55 = vector.broadcast %54 : vector<8x1xf32> to vector<8x3xf32>
    %56 = arith.divf %52, %55 : vector<8x3xf32>
    %57 = vector.extract_strided_slice %56 {offsets = [0, 0], sizes = [8, 1], strides = [1, 1]} : vector<8x3xf32> to vector<8x1xf32>
    %58 = vector.extract_strided_slice %16 {offsets = [0, 0], sizes = [8, 16], strides = [1, 1]} : vector<8x48xf32> to vector<8x16xf32>
    %59 = vector.broadcast %57 : vector<8x1xf32> to vector<8x16xf32>
    %60 = arith.mulf %59, %58 : vector<8x16xf32>
    %61 = vector.extract_strided_slice %56 {offsets = [0, 1], sizes = [8, 1], strides = [1, 1]} : vector<8x3xf32> to vector<8x1xf32>
    %62 = vector.extract_strided_slice %16 {offsets = [0, 16], sizes = [8, 16], strides = [1, 1]} : vector<8x48xf32> to vector<8x16xf32>
    %63 = vector.broadcast %61 : vector<8x1xf32> to vector<8x16xf32>
    %64 = arith.mulf %63, %62 : vector<8x16xf32>
    %65 = arith.addf %60, %64 : vector<8x16xf32>
    %66 = vector.extract_strided_slice %56 {offsets = [0, 2], sizes = [8, 1], strides = [1, 1]} : vector<8x3xf32> to vector<8x1xf32>
    %67 = vector.extract_strided_slice %16 {offsets = [0, 32], sizes = [8, 16], strides = [1, 1]} : vector<8x48xf32> to vector<8x16xf32>
    %68 = vector.broadcast %66 : vector<8x1xf32> to vector<8x16xf32>
    %69 = arith.mulf %68, %67 : vector<8x16xf32>
    %70 = arith.addf %65, %69 : vector<8x16xf32>
    %71 = arith.addf %13, %70 : vector<8x16xf32>
    %72 = tpu.concatenate %44, %71 in 1 : vector<8x16xf32>, vector<8x16xf32> -> vector<8x32xf32>
    %c0_12 = arith.constant 0 : index
    %c0_13 = arith.constant 0 : index
    %73 = vector.load %arg3[%c0_12, %c0_13] : memref<33x16xf32, #tpu.memory_space<vmem>>, vector<32x16xf32>
    %c32 = arith.constant 32 : index
    %c0_14 = arith.constant 0 : index
    %74 = vector.load %arg3[%c32, %c0_14] : memref<33x16xf32, #tpu.memory_space<vmem>>, vector<1x16xf32>
    %cst_15 = arith.constant dense<0.000000e+00> : vector<8x16xf32>
    %75 = tpu.matmul %72, %73, %cst_15 {dimension_numbers = #tpu.dot_dimension_numbers<[1], [0], [0], [1], [0, 0, 1, 1], [], []>} : vector<8x32xf32>, vector<32x16xf32>, vector<8x16xf32> -> vector<8x16xf32>
    %76 = vector.broadcast %74 : vector<1x16xf32> to vector<8x16xf32>
    %77 = arith.addf %75, %76 : vector<8x16xf32>
    %cst_16 = arith.constant 0.000000e+00 : f32
    %78 = vector.broadcast %cst_16 : f32 to vector<8x16xf32>
    %79 = arith.maximumf %77, %78 : vector<8x16xf32>
    %c0_17 = arith.constant 0 : index
    %c0_18 = arith.constant 0 : index
    %80 = vector.load %arg4[%c0_17, %c0_18] : memref<17x2xf32, #tpu.memory_space<vmem>>, vector<16x2xf32>
    %c16 = arith.constant 16 : index
    %c0_19 = arith.constant 0 : index
    %81 = vector.load %arg4[%c16, %c0_19] : memref<17x2xf32, #tpu.memory_space<vmem>>, vector<1x2xf32>
    %cst_20 = arith.constant dense<0.000000e+00> : vector<8x2xf32>
    %82 = tpu.matmul %79, %80, %cst_20 {dimension_numbers = #tpu.dot_dimension_numbers<[1], [0], [0], [1], [0, 0, 1, 1], [], []>} : vector<8x16xf32>, vector<16x2xf32>, vector<8x2xf32> -> vector<8x2xf32>
    %83 = vector.broadcast %81 : vector<1x2xf32> to vector<8x2xf32>
    %84 = arith.addf %82, %83 : vector<8x2xf32>
    %85 = tpu.iota {dimensions = array<i32: 1>} : vector<8x2xi32>
    %c0_i32 = arith.constant 0 : i32
    %86 = vector.broadcast %c0_i32 : i32 to vector<8x2xi32>
    %87 = arith.cmpi eq, %85, %86 : vector<8x2xi32>
    %88 = arith.negf %84 : vector<8x2xf32>
    %89 = math.exp %88 : vector<8x2xf32>
    %cst_21 = arith.constant 1.000000e+00 : f32
    %90 = vector.broadcast %cst_21 : f32 to vector<8x2xf32>
    %91 = arith.addf %90, %89 : vector<8x2xf32>
    %92 = arith.divf %90, %91 : vector<8x2xf32>
    %93 = arith.select %87, %92, %84 : vector<8x2xi1>, vector<8x2xf32>
    %cst_22 = arith.constant 1.000000e-15 : f32
    %cst_23 = arith.constant 1.000000e+00 : f32
    %94 = vector.broadcast %cst_22 : f32 to vector<8x2xf32>
    %95 = arith.maximumf %94, %93 : vector<8x2xf32>
    %96 = vector.broadcast %cst_23 : f32 to vector<8x2xf32>
    %97 = arith.minimumf %96, %95 : vector<8x2xf32>
    %c0_24 = arith.constant 0 : index
    %c0_25 = arith.constant 0 : index
    %98 = vector.load %arg5[%c0_24, %c0_25] : memref<8x2xf32, #tpu.memory_space<vmem>>, vector<8x2xf32>
    tpu.vector_store %arg5[%c0_24, %c0_25], %97 {strides = array<i32>} : memref<8x2xf32, #tpu.memory_space<vmem>>, vector<8x2xf32>,
    return
  }
  func.func @transform_0(%arg0: i32) -> (i32, i32) {
    %c0_i32 = arith.constant 0 : i32
    %c0_i32_0 = arith.constant 0 : i32
    return %arg0, %c0_i32 : i32, i32
  }
  func.func @transform_1(%arg0: i32) -> (i32, i32) {
    %c0_i32 = arith.constant 0 : i32
    %c0_i32_0 = arith.constant 0 : i32
    %c0_i32_1 = arith.constant 0 : i32
    return %c0_i32, %c0_i32_0 : i32, i32
  }
  func.func @transform_2(%arg0: i32) -> (i32, i32) {
    %c0_i32 = arith.constant 0 : i32
    %c0_i32_0 = arith.constant 0 : i32
    %c0_i32_1 = arith.constant 0 : i32
    return %c0_i32, %c0_i32_0 : i32, i32
  }
  func.func @transform_3(%arg0: i32) -> (i32, i32) {
    %c0_i32 = arith.constant 0 : i32
    %c0_i32_0 = arith.constant 0 : i32
    %c0_i32_1 = arith.constant 0 : i32
    return %c0_i32, %c0_i32_0 : i32, i32
  }
  func.func @transform_4(%arg0: i32) -> (i32, i32) {
    %c0_i32 = arith.constant 0 : i32
    %c0_i32_0 = arith.constant 0 : i32
    return %arg0, %c0_i32 : i32, i32
  }
}

</mosaic_0001>

<llo_original>
// kernel: tpu_custom_call.1
$region0: #{tpu_custom_call.1}
  #allocation0 [shape = 'u32[]', space=smem, size = 0x4, offset = 0x4, fixed_abs, tag = 'smem constant byte address 0x4 - core index']
  #allocation1 [shape = 'u32[144,128]{1,0:T(1,128)}', space=vmem, size = 0x12000, scoped, tag = 'internal scratch']
  %s0 = inlined_call_operand.vmem [shape: f32[8,64], index: 0, kind: input, shape index: {}]
  %s1 = inlined_call_operand.hbm [shape: f32[129,86], index: 1, kind: input, shape index: {}]
  %s2 = inlined_call_operand.vmem [shape: f32[33,16], index: 2, kind: input, shape index: {}]
  %s3 = inlined_call_operand.vmem [shape: f32[17,2], index: 3, kind: input, shape index: {}]
  %s4 = inlined_call_operand.vmem [shape: f32[8,2], index: 4, kind: output, shape index: {}]
  %s5 = sld [smem:[#allocation0]]
  $region30: #{tpu_custom_call.1} parent=0
    _
  %s7 = ssub.s32 1, %s5
  %s8 = scalar_select 0, %s7, %s5
  $region1: #{tpu_custom_call.1} parent=0
    #allocation2 [shape = 'u8[69632]{0}', space=vmem, size = 0x11000, scoped, tag = 'input window, operand 1, single buffered']
    #allocation3 [shape = 's32[1]{0}', space=sflag, size = 0x4, scoped, tag = 'scoped memory for tpu_custom_call.1']
    %9 = vsyncpa [#allocation3], 0
    // Predicated region
    $region2: #{tpu_custom_call.1} parent=1 // pred_check
      _
    $region3: #{tpu_custom_call.1} parent=1 // pred_check_branch
      %11 = sbr.rel (0) target = $region5
    $region4: #{tpu_custom_call.1} parent=1 // pred_region
      _
    $region5: #{tpu_custom_call.1} parent=1 // pred_fallthru
      _
    // Predicated region
    $region6: #{tpu_custom_call.1} parent=1 // pred_check
      _
    $region7: #{tpu_custom_call.1} parent=1 // pred_check_branch
      %13 = sbr.rel (0) target = $region9
    $region8: #{tpu_custom_call.1} parent=1 // pred_region
      %s15 = ssub.s32 2176, 2176
      %16 = vsyncadd [#allocation3], %s15
      %s17 = sshll.u32 [#allocation2], 4
      %s18 = int_to_ptr.vmem [resolvable:$true] %s17
      %23 = dma.hbm_to_vmem [thread:$0]  %s1, 2176, %s18, [#allocation3], 128, 128, 8
    $region9: #{tpu_custom_call.1} parent=1 // pred_fallthru
      _
    // Predicated region
    $region10: #{tpu_custom_call.1} parent=1 // pred_check
      _
    $region11: #{tpu_custom_call.1} parent=1 // pred_check_branch
      %25 = sbr.rel (0) target = $region13
    $region12: #{tpu_custom_call.1} parent=1 // pred_region
      _
    $region13: #{tpu_custom_call.1} parent=1 // pred_fallthru
      _
    // Predicated region
    $region14: #{tpu_custom_call.1} parent=1 // pred_check
      _
    $region15: #{tpu_custom_call.1} parent=1 // pred_check_branch
      %27 = sbr.rel (0) target = $region17
    $region16: #{tpu_custom_call.1} parent=1 // pred_region
      _
    $region17: #{tpu_custom_call.1} parent=1 // pred_fallthru
      _
    // Predicated region
    $region18: #{tpu_custom_call.1} parent=1 // pred_check
      _
    $region19: #{tpu_custom_call.1} parent=1 // pred_check_branch
      %29 = sbr.rel (0) target = $region21
    $region20: #{tpu_custom_call.1} parent=1 // pred_region
      %30 = dma.done [#allocation3], 2176
    $region21: #{tpu_custom_call.1} parent=1 // pred_fallthru
      _
    %v31 = vld [vmem:[%s0] sm:$0xff]
    %v32 = vmul.f32 %v31, %v31
    %34 = vrot.lane.b32.xlu0 %v32, 64
    %v35 = vpop.permute.xlu0 %34
    %vm37 = vcmask 523264
    %v38 = vsel %vm37, %v31, %v35
    %v39 = vld [vmem:[#allocation2] sm:$0xff]
    %v40 = vld [vmem:[#allocation2 + $0x8] sm:$0xff]
    %v41 = vld [vmem:[#allocation2 + $0x10] sm:$0xff]
    %v42 = vld [vmem:[#allocation2 + $0x18] sm:$0xff]
    %v43 = vld [vmem:[#allocation2 + $0x20] sm:$0xff]
    %v44 = vld [vmem:[#allocation2 + $0x28] sm:$0xff]
    %v45 = vld [vmem:[#allocation2 + $0x30] sm:$0xff]
    %v46 = vld [vmem:[#allocation2 + $0x38] sm:$0xff]
    %v47 = vld [vmem:[#allocation2 + $0x40] sm:$0xff]
    %v48 = vld [vmem:[#allocation2 + $0x48] sm:$0xff]
    %v49 = vld [vmem:[#allocation2 + $0x50] sm:$0xff]
    %v50 = vld [vmem:[#allocation2 + $0x58] sm:$0xff]
    %v51 = vld [vmem:[#allocation2 + $0x60] sm:$0xff]
    %v52 = vld [vmem:[#allocation2 + $0x68] sm:$0xff]
    %v53 = vld [vmem:[#allocation2 + $0x70] sm:$0xff]
    %v54 = vld [vmem:[#allocation2 + $0x78] sm:$0xff]
    %v55 = vld [vmem:[#allocation2 + $0x80] sm:$0x1]
    %v56 = vlaneseq
    %v57 = vshrl.u32 %v56, 7
    %v58 = vsub.s32 0, %v57
    %v59 = vrot.slane %v55, %v58
    %60 = vmatprep.subr.mxu0 0.0
    %61 = vmatpush1.msra.mxu0 %v39
    %62 = vmatprep.subr.mxu0 0.0
    %63 = vmatpush1.msra.mxu0 %v40
    %64 = vmatprep.subr.mxu0 0.0
    %65 = vmatpush1.msra.mxu0 %v41
    %66 = vmatprep.subr.mxu0 0.0
    %67 = vmatpush1.msra.mxu0 %v42
    %68 = vmatprep.subr.mxu0 0.0
    %69 = vmatpush1.msra.mxu0 %v43
    %70 = vmatprep.subr.mxu0 0.0
    %71 = vmatpush1.msra.mxu0 %v44
    %72 = vmatprep.subr.mxu0 0.0
    %73 = vmatpush1.msra.mxu0 %v45
    %74 = vmatprep.subr.mxu0 0.0
    %75 = vmatpush1.msra.mxu0 %v46
    %76 = vmatprep.subr.mxu0 0.0
    %77 = vmatpush1.msra.mxu0 %v47
    %78 = vmatprep.subr.mxu0 0.0
    %79 = vmatpush1.msra.mxu0 %v48
    %80 = vmatprep.subr.mxu0 0.0
    %81 = vmatpush1.msra.mxu0 %v49
    %82 = vmatprep.subr.mxu0 0.0
    %83 = vmatpush1.msra.mxu0 %v50
    %84 = vmatprep.subr.mxu0 0.0
    %85 = vmatpush1.msra.mxu0 %v51
    %86 = vmatprep.subr.mxu0 0.0
    %87 = vmatpush1.msra.mxu0 %v52
    %88 = vmatprep.subr.mxu0 0.0
    %89 = vmatpush1.msra.mxu0 %v53
    %90 = vmatprep.subr.mxu0 0.0
    %91 = vmatpush1.msra.mxu0 %v54
    %92 = vmatprep.subr.mxu0 0.0
    %93 = vmatpush1.msra.mxu0 0.0
    %94 = vmatprep.subr.mxu0 0.0
    %95 = vmatpush1.msra.mxu0 0.0
    %96 = vmatprep.subr.mxu0 0.0
    %97 = vmatpush1.msra.mxu0 0.0
    %98 = vmatprep.subr.mxu0 0.0
    %99 = vmatpush1.msra.mxu0 0.0
    %100 = vmatprep.subr.mxu0 0.0
    %101 = vmatpush1.msra.mxu0 0.0
    %102 = vmatprep.subr.mxu0 0.0
    %103 = vmatpush1.msra.mxu0 0.0
    %104 = vmatprep.subr.mxu0 0.0
    %105 = vmatpush1.msra.mxu0 0.0
    %106 = vmatprep.subr.mxu0 0.0
    %107 = vmatpush1.msra.mxu0 0.0
    %108 = vmatprep.subr.mxu0 0.0
    %109 = vmatpush1.msra.mxu0 0.0
    %110 = vmatprep.subr.mxu0 0.0
    %111 = vmatpush1.msra.mxu0 0.0
    %112 = vmatprep.subr.mxu0 0.0
    %113 = vmatpush1.msra.mxu0 0.0
    %114 = vmatprep.subr.mxu0 0.0
    %115 = vmatpush1.msra.mxu0 0.0
    %116 = vmatprep.subr.mxu0 0.0
    %117 = vmatpush1.msra.mxu0 0.0
    %118 = vmatprep.subr.mxu0 0.0
    %119 = vmatpush1.msra.mxu0 0.0
    %120 = vmatprep.subr.mxu0 0.0
    %121 = vmatpush1.msra.mxu0 0.0
    %122 = vmatprep.subr.mxu0 0.0
    %123 = vmatpush1.msra.mxu0 0.0
    %124 = vmatprep.mubr.f32.mxu0 0.0
    %125 = vmatmul.mubr.f32.gmra.mrb[0].mxu0 %v38
    %v126 = vpop.f32.mrb[0].mxu0
    %v127 = vadd.f32 %v59, %v126
    %v128 = vpop.f32.mrb[0].mxu0
    %129 = vdwg.mxu0
    %v130 = vmul.f32 %v127, %v127
    %132 = vrot.lane.b32.xlu0 %v127, 58
    %v133 = vpop.permute.xlu0 %132
    %v135 = vsub.f32 %v130, %v133
    %v136 = vmul.f32 %v135, 0.5
    %v137 = vmax.f32 %v127, 0.0
    %vm138 = vcmask 548352
    %v139 = vsel %vm138, %v127, -inf
    %140 = vmax.xlane.f32.xlu0 %v139
    %v141 = vpop.xlane.xlu0 %140
    %v142 = vsub.f32 %v127, %v141
    %v143 = vmul.f32 %v142, 1.442695
    %v144 = vpow.pop %v143
    %146 = vrot.lane.b32.xlu0 %v144, 64
    %v147 = vpop.permute.xlu0 %146
    %vm149 = vcmask 23552
    %v150 = vsel %vm149, %v147, 0.0
    %151 = vadd.xlane.f32.xlu0 %v150
    %v152 = vpop.xlane.xlu0 %151
    %v153 = vrcp.pop %v152
    %v154 = vmul.f32 %v144, %v153
    %156 = vset.pattern.permute.xlu0 64
    %157 = vperm.xlu0 %156, %v154
    %v158 = vpop.permute.xlu0 %157
    %v160 = vmul.f32 %v158, %v137
    %161 = vset.pattern.permute.xlu0 65
    %162 = vperm.xlu0 %161, %v154
    %v163 = vpop.permute.xlu0 %162
    %v165 = vmul.f32 %v163, %v137
    %167 = vrot.lane.b32.xlu0 %v165, 112
    %v168 = vpop.permute.xlu0 %167
    %v170 = vadd.f32 %v160, %v168
    %171 = vset.pattern.permute.xlu0 66
    %172 = vperm.xlu0 %171, %v154
    %v173 = vpop.permute.xlu0 %172
    %v175 = vmul.f32 %v173, %v137
    %177 = vrot.lane.b32.xlu0 %v175, 96
    %v178 = vpop.permute.xlu0 %177
    %v180 = vadd.f32 %v170, %v178
    %182 = vrot.lane.b32.xlu0 %v180, 112
    %v183 = vpop.permute.xlu0 %182
    %v185 = vadd.f32 %v136, %v183
    %vm186 = vcmask 572952
    %v187 = vsel %vm186, %v127, -inf
    %188 = vmax.xlane.f32.xlu0 %v187
    %v189 = vpop.xlane.xlu0 %188
    %v190 = vsub.f32 %v127, %v189
    %v191 = vmul.f32 %v190, 1.442695
    %v192 = vpow.pop %v191
    %194 = vrot.lane.b32.xlu0 %v192, 61
    %v195 = vpop.permute.xlu0 %194
    %v197 = vsel %vm149, %v195, 0.0
    %198 = vadd.xlane.f32.xlu0 %v197
    %v199 = vpop.xlane.xlu0 %198
    %v200 = vrcp.pop %v199
    %v201 = vmul.f32 %v192, %v200
    %203 = vset.pattern.permute.xlu0 67
    %204 = vperm.xlu0 %203, %v201
    %v205 = vpop.permute.xlu0 %204
    %v207 = vmul.f32 %v205, %v137
    %208 = vset.pattern.permute.xlu0 68
    %209 = vperm.xlu0 %208, %v201
    %v210 = vpop.permute.xlu0 %209
    %v212 = vmul.f32 %v210, %v137
    %214 = vrot.lane.b32.xlu0 %v212, 112
    %v215 = vpop.permute.xlu0 %214
    %v217 = vadd.f32 %v207, %v215
    %218 = vset.pattern.permute.xlu0 69
    %219 = vperm.xlu0 %218, %v201
    %v220 = vpop.permute.xlu0 %219
    %v222 = vmul.f32 %v220, %v137
    %224 = vrot.lane.b32.xlu0 %v222, 96
    %v225 = vpop.permute.xlu0 %224
    %v227 = vadd.f32 %v217, %v225
    %229 = vrot.lane.b32.xlu0 %v227, 112
    %v230 = vpop.permute.xlu0 %229
    %v232 = vadd.f32 %v136, %v230
    %234 = vrot.lane.b32.xlu0 %v232, 16
    %v235 = vpop.permute.xlu0 %234
    %vm237 = vcmask 130048
    %v238 = vsel %vm237, %v185, %v235
    %v239 = vld [vmem:[%s2] sm:$0xff]
    %v240 = vld [vmem:[%s2 + $0x8] sm:$0xff]
    %v241 = vld [vmem:[%s2 + $0x10] sm:$0xff]
    %v242 = vld [vmem:[%s2 + $0x18] sm:$0xff]
    %v243 = vld [vmem:[%s2 + $0x20] sm:$0x1]
    %v244 = vlaneseq
    %v245 = vshrl.u32 %v244, 7
    %v246 = vsub.s32 0, %v245
    %v247 = vrot.slane %v243, %v246
    %vm248 = vcmask 261120
    %v250 = vsel %vm248, %v238, 0
    %252 = vmatprep.subr.mxu0 0.0
    %253 = vmatpush1.msra.mxu0 %v239
    %254 = vmatprep.subr.mxu0 0.0
    %255 = vmatpush1.msra.mxu0 %v240
    %256 = vmatprep.subr.mxu0 0.0
    %257 = vmatpush1.msra.mxu0 %v241
    %258 = vmatprep.subr.mxu0 0.0
    %259 = vmatpush1.msra.mxu0 %v242
    %260 = vmatprep.subr.mxu0 0.0
    %261 = vmatpush1.msra.mxu0 0.0
    %262 = vmatprep.subr.mxu0 0.0
    %263 = vmatpush1.msra.mxu0 0.0
    %264 = vmatprep.subr.mxu0 0.0
    %265 = vmatpush1.msra.mxu0 0.0
    %266 = vmatprep.subr.mxu0 0.0
    %267 = vmatpush1.msra.mxu0 0.0
    %268 = vmatprep.subr.mxu0 0.0
    %269 = vmatpush1.msra.mxu0 0.0
    %270 = vmatprep.subr.mxu0 0.0
    %271 = vmatpush1.msra.mxu0 0.0
    %272 = vmatprep.subr.mxu0 0.0
    %273 = vmatpush1.msra.mxu0 0.0
    %274 = vmatprep.subr.mxu0 0.0
    %275 = vmatpush1.msra.mxu0 0.0
    %276 = vmatprep.subr.mxu0 0.0
    %277 = vmatpush1.msra.mxu0 0.0
    %278 = vmatprep.subr.mxu0 0.0
    %279 = vmatpush1.msra.mxu0 0.0
    %280 = vmatprep.subr.mxu0 0.0
    %281 = vmatpush1.msra.mxu0 0.0
    %282 = vmatprep.subr.mxu0 0.0
    %283 = vmatpush1.msra.mxu0 0.0
    %284 = vmatprep.subr.mxu0 0.0
    %285 = vmatpush1.msra.mxu0 0.0
    %286 = vmatprep.subr.mxu0 0.0
    %287 = vmatpush1.msra.mxu0 0.0
    %288 = vmatprep.subr.mxu0 0.0
    %289 = vmatpush1.msra.mxu0 0.0
    %290 = vmatprep.subr.mxu0 0.0
    %291 = vmatpush1.msra.mxu0 0.0
    %292 = vmatprep.subr.mxu0 0.0
    %293 = vmatpush1.msra.mxu0 0.0
    %294 = vmatprep.subr.mxu0 0.0
    %295 = vmatpush1.msra.mxu0 0.0
    %296 = vmatprep.subr.mxu0 0.0
    %297 = vmatpush1.msra.mxu0 0.0
    %298 = vmatprep.subr.mxu0 0.0
    %299 = vmatpush1.msra.mxu0 0.0
    %300 = vmatprep.subr.mxu0 0.0
    %301 = vmatpush1.msra.mxu0 0.0
    %302 = vmatprep.subr.mxu0 0.0
    %303 = vmatpush1.msra.mxu0 0.0
    %304 = vmatprep.subr.mxu0 0.0
    %305 = vmatpush1.msra.mxu0 0.0
    %306 = vmatprep.subr.mxu0 0.0
    %307 = vmatpush1.msra.mxu0 0.0
    %308 = vmatprep.subr.mxu0 0.0
    %309 = vmatpush1.msra.mxu0 0.0
    %310 = vmatprep.subr.mxu0 0.0
    %311 = vmatpush1.msra.mxu0 0.0
    %312 = vmatprep.subr.mxu0 0.0
    %313 = vmatpush1.msra.mxu0 0.0
    %314 = vmatprep.subr.mxu0 0.0
    %315 = vmatpush1.msra.mxu0 0.0
    %316 = vmatprep.mubr.f32.mxu0 0.0
    %317 = vmatmul.mubr.f32.gmra.mrb[0].mxu0 %v250
    %v318 = vpop.f32.mrb[0].mxu0
    %v319 = vadd.f32 %v247, %v318
    %v320 = vpop.f32.mrb[0].mxu0
    %321 = vdwg.mxu0
    %v322 = vmax.f32 %v319, 0.0
    %v323 = vld [vmem:[%s3] sm:$0xff]
    %v324 = vld [vmem:[%s3 + $0x8] sm:$0xff]
    %v325 = vld [vmem:[%s3 + $0x10] sm:$0x1]
    %v326 = vlaneseq
    %v327 = vshrl.u32 %v326, 7
    %v328 = vsub.s32 0, %v327
    %v329 = vrot.slane %v325, %v328
    %v331 = vsel %vm237, %v322, 0
    %333 = vmatprep.subr.mxu0 0.0
    %334 = vmatpush1.msra.mxu0 %v323
    %335 = vmatprep.subr.mxu0 0.0
    %336 = vmatpush1.msra.mxu0 %v324
    %337 = vmatprep.subr.mxu0 0.0
    %338 = vmatpush1.msra.mxu0 0.0
    %339 = vmatprep.subr.mxu0 0.0
    %340 = vmatpush1.msra.mxu0 0.0
    %341 = vmatprep.subr.mxu0 0.0
    %342 = vmatpush1.msra.mxu0 0.0
    %343 = vmatprep.subr.mxu0 0.0
    %344 = vmatpush1.msra.mxu0 0.0
    %345 = vmatprep.subr.mxu0 0.0
    %346 = vmatpush1.msra.mxu0 0.0
    %347 = vmatprep.subr.mxu0 0.0
    %348 = vmatpush1.msra.mxu0 0.0
    %349 = vmatprep.subr.mxu0 0.0
    %350 = vmatpush1.msra.mxu0 0.0
    %351 = vmatprep.subr.mxu0 0.0
    %352 = vmatpush1.msra.mxu0 0.0
    %353 = vmatprep.subr.mxu0 0.0
    %354 = vmatpush1.msra.mxu0 0.0
    %355 = vmatprep.subr.mxu0 0.0
    %356 = vmatpush1.msra.mxu0 0.0
    %357 = vmatprep.subr.mxu0 0.0
    %358 = vmatpush1.msra.mxu0 0.0
    %359 = vmatprep.subr.mxu0 0.0
    %360 = vmatpush1.msra.mxu0 0.0
    %361 = vmatprep.subr.mxu0 0.0
    %362 = vmatpush1.msra.mxu0 0.0
    %363 = vmatprep.subr.mxu0 0.0
    %364 = vmatpush1.msra.mxu0 0.0
    %365 = vmatprep.subr.mxu0 0.0
    %366 = vmatpush1.msra.mxu0 0.0
    %367 = vmatprep.subr.mxu0 0.0
    %368 = vmatpush1.msra.mxu0 0.0
    %369 = vmatprep.subr.mxu0 0.0
    %370 = vmatpush1.msra.mxu0 0.0
    %371 = vmatprep.subr.mxu0 0.0
    %372 = vmatpush1.msra.mxu0 0.0
    %373 = vmatprep.subr.mxu0 0.0
    %374 = vmatpush1.msra.mxu0 0.0
    %375 = vmatprep.subr.mxu0 0.0
    %376 = vmatpush1.msra.mxu0 0.0
    %377 = vmatprep.subr.mxu0 0.0
    %378 = vmatpush1.msra.mxu0 0.0
    %379 = vmatprep.subr.mxu0 0.0
    %380 = vmatpush1.msra.mxu0 0.0
    %381 = vmatprep.subr.mxu0 0.0
    %382 = vmatpush1.msra.mxu0 0.0
    %383 = vmatprep.subr.mxu0 0.0
    %384 = vmatpush1.msra.mxu0 0.0
    %385 = vmatprep.subr.mxu0 0.0
    %386 = vmatpush1.msra.mxu0 0.0
    %387 = vmatprep.subr.mxu0 0.0
    %388 = vmatpush1.msra.mxu0 0.0
    %389 = vmatprep.subr.mxu0 0.0
    %390 = vmatpush1.msra.mxu0 0.0
    %391 = vmatprep.subr.mxu0 0.0
    %392 = vmatpush1.msra.mxu0 0.0
    %393 = vmatprep.subr.mxu0 0.0
    %394 = vmatpush1.msra.mxu0 0.0
    %395 = vmatprep.subr.mxu0 0.0
    %396 = vmatpush1.msra.mxu0 0.0
    %397 = vmatprep.mubr.f32.mxu0 0.0
    %398 = vmatmul.mubr.f32.gmra.mrb[0].mxu0 %v331
    %v399 = vpop.f32.mrb[0].mxu0
    %v400 = vadd.f32 %v329, %v399
    %v401 = vpop.f32.mrb[0].mxu0
    %402 = vdwg.mxu0
    %v403 = vlaneseq
    %v404 = vand.u32 %v403, 127
    %vm405 = vcmp.eq.s32.totalorder %v404, 0
    %v406 = vxor.u32 %v400, 2147483648
    %v407 = vmul.f32 %v406, 1.442695
    %v408 = vpow.pop %v407
    %v409 = vadd.f32 %v408, 1.0
    %v410 = vrcp.pop %v409
    %v411 = vmul.f32 1.0, %v410
    %v412 = vsel %vm405, %v411, %v400
    %v413 = vmax.f32 %v412, 1e-15
    %v414 = vmin.f32 %v413, 1.0
    %vm415 = vcmask 15360
    %416 = vst.msk [vmem:[%s4] sm:$0xff] %vm415, %v414
    // Predicated region
    $region22: #{tpu_custom_call.1} parent=1 // pred_check
      _
    $region23: #{tpu_custom_call.1} parent=1 // pred_check_branch
      %418 = sbr.rel (0) target = $region25
    $region24: #{tpu_custom_call.1} parent=1 // pred_region
      _
    $region25: #{tpu_custom_call.1} parent=1 // pred_fallthru
      _
    // Predicated region
    $region26: #{tpu_custom_call.1} parent=1 // pred_check
      _
    $region27: #{tpu_custom_call.1} parent=1 // pred_check_branch
      %420 = sbr.rel (0) target = $region29
    $region28: #{tpu_custom_call.1} parent=1 // pred_region
      _
    $region29: #{tpu_custom_call.1} parent=1 // pred_fallthru
      _
    %421 = vsyncpa [#allocation3], 1

</llo_original>
